<compile_context>
chip_gen: v6e
topology: v6e:2x2x1
jax: 0.10.0
libtpu: 0.0.40
codegen_flags: <defaults>
</compile_context>

<pallas_src>
import jax
import jax.numpy as jnp
from jax import lax
from jax.experimental import pallas as pl
from jax.experimental.pallas import tpu as pltpu

BN_EPS = 1e-5


def _round_up(x, m):
    return (x + m - 1) // m * m


def _pack_vectors(params, feature_dim):
    """Pack b1,g1,be1,b2,g2,be2,b3 into one (8, max(32,feature_dim)) f32 array."""
    vec_dim = max(32, feature_dim)

    def row(v):
        v = jnp.asarray(v, jnp.float32).reshape(1, -1)
        return jnp.pad(v, ((0, 0), (0, vec_dim - v.shape[1])))

    rows = [params["b1"], params["g1"], params["be1"],
            params["b2"], params["g2"], params["be2"],
            params["b3"], jnp.zeros((1, vec_dim), jnp.float32)]
    return jnp.concatenate([row(r) for r in rows], axis=0)   # (8, vec_dim)


# ---------------------------------------------------------------------------
# Single-block fast path: whole (padded) batch in one VMEM tile, exact BN.
# ---------------------------------------------------------------------------
def _make_single_kernel(n_valid, n_pad):
    padded = (n_pad != n_valid)
    inv_n = 1.0 / float(n_valid)

    def kernel(x_ref, w1_ref, w2_ref, w3_ref, pvec_ref, out_ref):
        fd = out_ref.shape[-1]
        b1, g1, be1 = pvec_ref[0:1, :32], pvec_ref[1:2, :32], pvec_ref[2:3, :32]
        b2, g2, be2 = pvec_ref[3:4, :16], pvec_ref[4:5, :16], pvec_ref[5:6, :16]
        b3 = pvec_ref[6:7, :fd]

        if padded:
            rows = lax.broadcasted_iota(jnp.int32, (n_pad, 1), 0)
            row_mask = rows < n_valid
        else:
            row_mask = None

        def bn_relu(h, g, be):
            hm = h if row_mask is None else jnp.where(row_mask, h, 0.0)
            s = jnp.sum(hm, axis=0, keepdims=True)
            ss = jnp.sum(hm * hm, axis=0, keepdims=True)
            mu = s * inv_n
            var = jnp.maximum(ss * inv_n - mu * mu, 0.0)
            scale = g * lax.rsqrt(var + BN_EPS)
            shift = be - mu * scale
            return jnp.maximum(h * scale + shift, 0.0)

        h1 = jnp.dot(x_ref[...], w1_ref[...],
                     preferred_element_type=jnp.float32) + b1
        a1 = bn_relu(h1, g1, be1)
        h2 = jnp.dot(a1, w2_ref[...],
                     preferred_element_type=jnp.float32) + b2
        a2 = bn_relu(h2, g2, be2)
        out = jnp.dot(a2, w3_ref[...],
                      preferred_element_type=jnp.float32) + b3
        out_ref[...] = out.astype(out_ref.dtype)

    return kernel


# ---------------------------------------------------------------------------
# Tiled 3-phase path: streaming batch tiles, cross-tile BN stats in scratch.
# ---------------------------------------------------------------------------
def _make_tiled_kernel(n_valid, tile_n, n_pad):
    padded = (n_pad != n_valid)
    inv_n = 1.0 / float(n_valid)

    def kernel(x_ref, w1_ref, w2_ref, w3_ref, pvec_ref, out_ref,
               bn1_ref, bn2_ref):
        p = pl.program_id(0)   # phase: 0 = BN1 stats, 1 = BN2 stats, 2 = output
        i = pl.program_id(1)   # batch tile

        fd = out_ref.shape[-1]
        b1, g1, be1 = pvec_ref[0:1, :32], pvec_ref[1:2, :32], pvec_ref[2:3, :32]
        b2, g2, be2 = pvec_ref[3:4, :16], pvec_ref[4:5, :16], pvec_ref[5:6, :16]
        b3 = pvec_ref[6:7, :fd]

        def _masked(h):
            # Zero out pure batch-padding rows so they do not contaminate the
            # BN statistics.
            if not padded:
                return h
            rows = i * tile_n + lax.broadcasted_iota(jnp.int32, (tile_n, 1), 0)
            return jnp.where(rows < n_valid, h, 0.0)

        @pl.when((p == 0) & (i == 0))
        def _init():
            bn1_ref[...] = jnp.zeros_like(bn1_ref)
            bn2_ref[...] = jnp.zeros_like(bn2_ref)

        # Layer 1 linear (recomputed every phase; MXU is essentially idle).
        h1 = jnp.dot(x_ref[...], w1_ref[...],
                     preferred_element_type=jnp.float32) + b1

        @pl.when(p == 0)
        def _bn1_stats():
            h = _masked(h1)
            bn1_ref[0:1, :] = bn1_ref[0:1, :] + jnp.sum(h, axis=0, keepdims=True)
            bn1_ref[1:2, :] = bn1_ref[1:2, :] + jnp.sum(h * h, axis=0,
                                                        keepdims=True)

        @pl.when((p == 1) & (i == 0))
        def _bn1_finalize():
            mu = bn1_ref[0:1, :] * inv_n
            var = jnp.maximum(bn1_ref[1:2, :] * inv_n - mu * mu, 0.0)
            scale = g1 * lax.rsqrt(var + BN_EPS)
            bn1_ref[2:3, :] = scale
            bn1_ref[3:4, :] = be1 - mu * scale

        # BN1 folded scale/shift + ReLU + layer-2 linear.
        a1 = jnp.maximum(h1 * bn1_ref[2:3, :] + bn1_ref[3:4, :], 0.0)
        h2 = jnp.dot(a1, w2_ref[...],
                     preferred_element_type=jnp.float32) + b2

        @pl.when(p == 1)
        def _bn2_stats():
            h = _masked(h2)
            bn2_ref[0:1, :] = bn2_ref[0:1, :] + jnp.sum(h, axis=0, keepdims=True)
            bn2_ref[1:2, :] = bn2_ref[1:2, :] + jnp.sum(h * h, axis=0,
                                                        keepdims=True)

        @pl.when((p == 2) & (i == 0))
        def _bn2_finalize():
            mu = bn2_ref[0:1, :] * inv_n
            var = jnp.maximum(bn2_ref[1:2, :] * inv_n - mu * mu, 0.0)
            scale = g2 * lax.rsqrt(var + BN_EPS)
            bn2_ref[2:3, :] = scale
            bn2_ref[3:4, :] = be2 - mu * scale

        @pl.when(p == 2)
        def _emit():
            a2 = jnp.maximum(h2 * bn2_ref[2:3, :] + bn2_ref[3:4, :], 0.0)
            out = jnp.dot(a2, w3_ref[...],
                          preferred_element_type=jnp.float32) + b3
            out_ref[...] = out.astype(out_ref.dtype)

    return kernel


def _vmem_estimate(tile_n, input_dim, feature_dim, x_bytes):
    lane = 128

    def buf(rows, cols, itemsize):
        return _round_up(max(rows, 1), 8) * _round_up(max(cols, 1), lane) * itemsize

    est = (2 * buf(tile_n, input_dim, x_bytes)          # x tile (double-buffered)
           + 2 * buf(tile_n, feature_dim, 4)            # out tile
           + 2 * (buf(input_dim, 32, x_bytes)           # w1
                  + buf(32, 16, 4) + buf(16, feature_dim, 4)   # w2, w3
                  + buf(8, 32, 4))                      # packed vectors
           + buf(8, 32, 4) + buf(8, 16, 4))             # BN scratch
    return int(min(64 * 1024 * 1024, max(16 * 1024 * 1024, 2 * est)))


def network_forward(x, params, *, tile_n=1024, use_bf16=False):
    """x: (N, input_dim) f32. params: dict of weights (see init_params)."""
    n, input_dim = x.shape
    feature_dim = params["w3"].shape[1]

    # Tile granularity: 8 sublanes (f32), 16 when the x stream is bf16-packed.
    gran = 16 if use_bf16 else 8
    tile_n = max(gran, min(tile_n, _round_up(n, gran)))
    n_pad = _round_up(n, tile_n)
    num_tiles = n_pad // tile_n

    if n_pad != n:
        x = jnp.pad(x, ((0, n_pad - n), (0, 0)))

    w1, w2, w3 = params["w1"], params["w2"], params["w3"]
    if use_bf16:
        x = x.astype(jnp.bfloat16)
        w1 = w1.astype(jnp.bfloat16)

    pvec = _pack_vectors(params, feature_dim)
    x_bytes = x.dtype.itemsize
    vmem_limit = _vmem_estimate(tile_n, input_dim, feature_dim, x_bytes)

    flops = 2 * n_pad * (input_dim * 32 + 32 * 16 + 16 * feature_dim)
    bytes_once = (n_pad * input_dim * x_bytes + 4 * n_pad * feature_dim
                  + w1.size * w1.dtype.itemsize
                  + 4 * (w2.size + w3.size + pvec.size))

    if num_tiles == 1:
        # --- fast path: whole batch resident, single grid step --------------
        kernel = _make_single_kernel(n, n_pad)
        const1 = lambda i: (0, 0)
        out = pl.pallas_call(
            kernel,
            out_shape=jax.ShapeDtypeStruct((n_pad, feature_dim), jnp.float32),
            grid=(1,),
            in_specs=[
                pl.BlockSpec((n_pad, input_dim), const1),
                pl.BlockSpec(w1.shape, const1),
                pl.BlockSpec(w2.shape, const1),
                pl.BlockSpec(w3.shape, const1),
                pl.BlockSpec(pvec.shape, const1),
            ],
            out_specs=pl.BlockSpec((n_pad, feature_dim), const1),
            compiler_params=pltpu.CompilerParams(
                dimension_semantics=("arbitrary",),
                vmem_limit_bytes=vmem_limit,
            ),
            cost_estimate=pl.CostEstimate(
                flops=int(flops), transcendentals=48,
                bytes_accessed=int(bytes_once)),
        )(x, w1, w2, w3, pvec)
    else:
        # --- streaming 3-phase path ------------------------------------------
        kernel = _make_tiled_kernel(n, tile_n, n_pad)
        const = lambda p, i: (0, 0)
        tile_map = lambda p, i: (i, 0)
        out = pl.pallas_call(
            kernel,
            out_shape=jax.ShapeDtypeStruct((n_pad, feature_dim), jnp.float32),
            grid_spec=pltpu.PrefetchScalarGridSpec(
                num_scalar_prefetch=0,
                grid=(3, num_tiles),
                in_specs=[
                    pl.BlockSpec((tile_n, input_dim), tile_map),  # x (streamed)
                    pl.BlockSpec(w1.shape, const),                # resident params
                    pl.BlockSpec(w2.shape, const),
                    pl.BlockSpec(w3.shape, const),
                    pl.BlockSpec(pvec.shape, const),
                ],
                out_specs=pl.BlockSpec((tile_n, feature_dim), tile_map),
                scratch_shapes=[
                    pltpu.VMEM((8, 32), jnp.float32),  # BN1: sum,sumsq,scale,shift
                    pltpu.VMEM((8, 16), jnp.float32),  # BN2: sum,sumsq,scale,shift
                ],
            ),
            compiler_params=pltpu.CompilerParams(
                # Tile axis carries the cross-tile BN accumulator -> sequential.
                dimension_semantics=("arbitrary", "arbitrary"),
                vmem_limit_bytes=vmem_limit,
            ),
            cost_estimate=pl.CostEstimate(
                flops=int(3 * flops), transcendentals=96,
                bytes_accessed=int(3 * bytes_once)),
        )(x, w1, w2, w3, pvec)

    return out[:n] if n_pad != n else out


def init_params(key, input_dim, feature_dim):
    """Deterministic synthetic parameters (shapes match nn.Module __init__)."""
    dims = [(input_dim, 32), (32, 16), (16, feature_dim)]
    keys = jax.random.split(key, 2 * len(dims))
    p = {}
    for i, (fan_in, fan_out) in enumerate(dims, start=1):
        bound = float(fan_in) ** -0.5
        # Linear weight stored as (in, out)  (transpose of PyTorch's (out, in)).
        p[f"w{i}"] = jax.random.uniform(
            keys[2 * i - 2], (fan_in, fan_out), jnp.float32, -bound, bound)
        p[f"b{i}"] = jax.random.uniform(
            keys[2 * i - 1], (1, fan_out), jnp.float32, -bound, bound)
    # BatchNorm affine params: PyTorch default init (gamma=1, beta=0).
    p["g1"] = jnp.ones((1, 32), jnp.float32)
    p["be1"] = jnp.zeros((1, 32), jnp.float32)
    p["g2"] = jnp.ones((1, 16), jnp.float32)
    p["be2"] = jnp.zeros((1, 16), jnp.float32)
    return p


def reference_forward(x, params):
    """Pure-JAX reference for correctness checking."""
    def bn_relu(h, g, b):
        mu = jnp.mean(h, axis=0, keepdims=True)
        var = jnp.mean((h - mu) ** 2, axis=0, keepdims=True)
        return jnp.maximum((h - mu) / jnp.sqrt(var + BN_EPS) * g + b, 0.0)
    h = bn_relu(x @ params["w1"] + params["b1"], params["g1"], params["be1"])
    h = bn_relu(h @ params["w2"] + params["b2"], params["g2"], params["be2"])
    return h @ params["w3"] + params["b3"]


if __name__ == "__main__":
    N, INPUT_DIM, FEATURE_DIM = 8, 16, 8

    key = jax.random.PRNGKey(0)
    kx, kp, kx2 = jax.random.split(key, 3)
    params = init_params(kp, INPUT_DIM, FEATURE_DIM)

    # 1) Single-block fast path (whole batch in one VMEM tile, exact f32 BN).
    x = jax.random.normal(kx, (N, INPUT_DIM), jnp.float32)
    out = jax.block_until_ready(network_forward(x, params))
    ref = reference_forward(x, params)
    assert out.shape == (N, FEATURE_DIM)
    assert jnp.allclose(out, ref, atol=2e-4, rtol=2e-4), "mismatch (single tile)"

    # 2) Multi-tile + padded batch: exercises the gridded 3-phase BN path
    #    (N=20 not a multiple of the tile, whole-batch stats via VMEM scratch).
    N2 = 20
    x2 = jax.random.normal(kx2, (N2, INPUT_DIM), jnp.float32)
    out2 = jax.block_until_ready(network_forward(x2, params, tile_n=8))
    ref2 = reference_forward(x2, params)
    assert out2.shape == (N2, FEATURE_DIM)
    assert jnp.allclose(out2, ref2, atol=2e-4, rtol=2e-4), "mismatch (multi tile)"

    # 3) bf16 x/W1 streaming path (smoke test: compiles, finite output).
    out3 = jax.block_until_ready(network_forward(x, params, use_bf16=True))
    assert out3.shape == (N, FEATURE_DIM)
    assert bool(jnp.all(jnp.isfinite(out3)))

    print("KERNEL_OK")
</pallas_src>

<mosaic_0001>
module attributes {stable_mosaic.version = 11 : i64} {
  func.func @kernel(%arg0: i32, %arg1: memref<8x16xf32, #tpu.memory_space<vmem>>, %arg2: memref<16x32xf32, #tpu.memory_space<vmem>>, %arg3: memref<32x16xf32, #tpu.memory_space<vmem>>, %arg4: memref<16x8xf32, #tpu.memory_space<vmem>>, %arg5: memref<8x32xf32, #tpu.memory_space<vmem>>, %arg6: memref<8x8xf32, #tpu.memory_space<vmem>>) attributes {dimension_semantics = [#tpu.dimension_semantics<arbitrary>], iteration_bounds = array<i64: 1>, scalar_prefetch = 0 : i64, scratch_operands = 0 : i64, tpu.core_type = #tpu.core_type<tc>, window_params = [{pipeline_mode = #tpu.pipeline_mode<synchronous>, transform_indices = @transform_0, window_bounds = array<i64: 8, 16>}, {pipeline_mode = #tpu.pipeline_mode<synchronous>, transform_indices = @transform_1, window_bounds = array<i64: 16, 32>}, {pipeline_mode = #tpu.pipeline_mode<synchronous>, transform_indices = @transform_2, window_bounds = array<i64: 32, 16>}, {pipeline_mode = #tpu.pipeline_mode<synchronous>, transform_indices = @transform_3, window_bounds = array<i64: 16, 8>}, {pipeline_mode = #tpu.pipeline_mode<synchronous>, transform_indices = @transform_4, window_bounds = array<i64: 8, 32>}, {pipeline_mode = #tpu.pipeline_mode<synchronous>, transform_indices = @transform_5, window_bounds = array<i64: 8, 8>}]} {
    %c0 = arith.constant 0 : index
    %c0_0 = arith.constant 0 : index
    %0 = vector.load %arg5[%c0, %c0_0] : memref<8x32xf32, #tpu.memory_space<vmem>>, vector<1x32xf32>
    %c1 = arith.constant 1 : index
    %c0_1 = arith.constant 0 : index
    %1 = vector.load %arg5[%c1, %c0_1] : memref<8x32xf32, #tpu.memory_space<vmem>>, vector<1x32xf32>
    %c2 = arith.constant 2 : index
    %c0_2 = arith.constant 0 : index
    %2 = vector.load %arg5[%c2, %c0_2] : memref<8x32xf32, #tpu.memory_space<vmem>>, vector<1x32xf32>
    %c3 = arith.constant 3 : index
    %c0_3 = arith.constant 0 : index
    %3 = vector.load %arg5[%c3, %c0_3] : memref<8x32xf32, #tpu.memory_space<vmem>>, vector<1x16xf32>
    %c4 = arith.constant 4 : index
    %c0_4 = arith.constant 0 : index
    %4 = vector.load %arg5[%c4, %c0_4] : memref<8x32xf32, #tpu.memory_space<vmem>>, vector<1x16xf32>
    %c5 = arith.constant 5 : index
    %c0_5 = arith.constant 0 : index
    %5 = vector.load %arg5[%c5, %c0_5] : memref<8x32xf32, #tpu.memory_space<vmem>>, vector<1x16xf32>
    %c6 = arith.constant 6 : index
    %c0_6 = arith.constant 0 : index
    %6 = vector.load %arg5[%c6, %c0_6] : memref<8x32xf32, #tpu.memory_space<vmem>>, vector<1x8xf32>
    %c0_7 = arith.constant 0 : index
    %c0_8 = arith.constant 0 : index
    %7 = vector.load %arg1[%c0_7, %c0_8] : memref<8x16xf32, #tpu.memory_space<vmem>>, vector<8x16xf32>
    %c0_9 = arith.constant 0 : index
    %c0_10 = arith.constant 0 : index
    %8 = vector.load %arg2[%c0_9, %c0_10] : memref<16x32xf32, #tpu.memory_space<vmem>>, vector<16x32xf32>
    %cst = arith.constant dense<0.000000e+00> : vector<8x32xf32>
    %9 = tpu.matmul %7, %8, %cst {dimension_numbers = #tpu.dot_dimension_numbers<[1], [0], [0], [1], [0, 0, 1, 1], [], []>} : vector<8x16xf32>, vector<16x32xf32>, vector<8x32xf32> -> vector<8x32xf32>
    %10 = vector.broadcast %0 : vector<1x32xf32> to vector<8x32xf32>
    %11 = arith.addf %9, %10 : vector<8x32xf32>
    %cst_11 = arith.constant dense<0.000000e+00> : vector<32xf32>
    %12 = vector.multi_reduction <add>, %11, %cst_11 [0] : vector<8x32xf32> to vector<32xf32>
    %13 = vector.shape_cast %12 : vector<32xf32> to vector<1x32xf32>
    %14 = arith.mulf %11, %11 : vector<8x32xf32>
    %cst_12 = arith.constant dense<0.000000e+00> : vector<32xf32>
    %15 = vector.multi_reduction <add>, %14, %cst_12 [0] : vector<8x32xf32> to vector<32xf32>
    %16 = vector.shape_cast %15 : vector<32xf32> to vector<1x32xf32>
    %cst_13 = arith.constant 1.250000e-01 : f32
    %17 = vector.broadcast %cst_13 : f32 to vector<1x32xf32>
    %18 = arith.mulf %13, %17 : vector<1x32xf32>
    %cst_14 = arith.constant 1.250000e-01 : f32
    %19 = vector.broadcast %cst_14 : f32 to vector<1x32xf32>
    %20 = arith.mulf %16, %19 : vector<1x32xf32>
    %21 = arith.mulf %18, %18 : vector<1x32xf32>
    %22 = arith.subf %20, %21 : vector<1x32xf32>
    %cst_15 = arith.constant 0.000000e+00 : f32
    %23 = vector.broadcast %cst_15 : f32 to vector<1x32xf32>
    %24 = arith.maximumf %22, %23 : vector<1x32xf32>
    %cst_16 = arith.constant 9.99999974E-6 : f32
    %25 = vector.broadcast %cst_16 : f32 to vector<1x32xf32>
    %26 = arith.addf %24, %25 : vector<1x32xf32>
    %27 = math.rsqrt %26 : vector<1x32xf32>
    %28 = arith.mulf %1, %27 : vector<1x32xf32>
    %29 = arith.mulf %18, %28 : vector<1x32xf32>
    %30 = arith.subf %2, %29 : vector<1x32xf32>
    %31 = vector.broadcast %28 : vector<1x32xf32> to vector<8x32xf32>
    %32 = arith.mulf %11, %31 : vector<8x32xf32>
    %33 = vector.broadcast %30 : vector<1x32xf32> to vector<8x32xf32>
    %34 = arith.addf %32, %33 : vector<8x32xf32>
    %cst_17 = arith.constant 0.000000e+00 : f32
    %35 = vector.broadcast %cst_17 : f32 to vector<8x32xf32>
    %36 = arith.maximumf %34, %35 : vector<8x32xf32>
    %c0_18 = arith.constant 0 : index
    %c0_19 = arith.constant 0 : index
    %37 = vector.load %arg3[%c0_18, %c0_19] : memref<32x16xf32, #tpu.memory_space<vmem>>, vector<32x16xf32>
    %cst_20 = arith.constant dense<0.000000e+00> : vector<8x16xf32>
    %38 = tpu.matmul %36, %37, %cst_20 {dimension_numbers = #tpu.dot_dimension_numbers<[1], [0], [0], [1], [0, 0, 1, 1], [], []>} : vector<8x32xf32>, vector<32x16xf32>, vector<8x16xf32> -> vector<8x16xf32>
    %39 = vector.broadcast %3 : vector<1x16xf32> to vector<8x16xf32>
    %40 = arith.addf %38, %39 : vector<8x16xf32>
    %cst_21 = arith.constant dense<0.000000e+00> : vector<16xf32>
    %41 = vector.multi_reduction <add>, %40, %cst_21 [0] : vector<8x16xf32> to vector<16xf32>
    %42 = vector.shape_cast %41 : vector<16xf32> to vector<1x16xf32>
    %43 = arith.mulf %40, %40 : vector<8x16xf32>
    %cst_22 = arith.constant dense<0.000000e+00> : vector<16xf32>
    %44 = vector.multi_reduction <add>, %43, %cst_22 [0] : vector<8x16xf32> to vector<16xf32>
    %45 = vector.shape_cast %44 : vector<16xf32> to vector<1x16xf32>
    %cst_23 = arith.constant 1.250000e-01 : f32
    %46 = vector.broadcast %cst_23 : f32 to vector<1x16xf32>
    %47 = arith.mulf %42, %46 : vector<1x16xf32>
    %cst_24 = arith.constant 1.250000e-01 : f32
    %48 = vector.broadcast %cst_24 : f32 to vector<1x16xf32>
    %49 = arith.mulf %45, %48 : vector<1x16xf32>
    %50 = arith.mulf %47, %47 : vector<1x16xf32>
    %51 = arith.subf %49, %50 : vector<1x16xf32>
    %cst_25 = arith.constant 0.000000e+00 : f32
    %52 = vector.broadcast %cst_25 : f32 to vector<1x16xf32>
    %53 = arith.maximumf %51, %52 : vector<1x16xf32>
    %cst_26 = arith.constant 9.99999974E-6 : f32
    %54 = vector.broadcast %cst_26 : f32 to vector<1x16xf32>
    %55 = arith.addf %53, %54 : vector<1x16xf32>
    %56 = math.rsqrt %55 : vector<1x16xf32>
    %57 = arith.mulf %4, %56 : vector<1x16xf32>
    %58 = arith.mulf %47, %57 : vector<1x16xf32>
    %59 = arith.subf %5, %58 : vector<1x16xf32>
    %60 = vector.broadcast %57 : vector<1x16xf32> to vector<8x16xf32>
    %61 = arith.mulf %40, %60 : vector<8x16xf32>
    %62 = vector.broadcast %59 : vector<1x16xf32> to vector<8x16xf32>
    %63 = arith.addf %61, %62 : vector<8x16xf32>
    %cst_27 = arith.constant 0.000000e+00 : f32
    %64 = vector.broadcast %cst_27 : f32 to vector<8x16xf32>
    %65 = arith.maximumf %63, %64 : vector<8x16xf32>
    %c0_28 = arith.constant 0 : index
    %c0_29 = arith.constant 0 : index
    %66 = vector.load %arg4[%c0_28, %c0_29] : memref<16x8xf32, #tpu.memory_space<vmem>>, vector<16x8xf32>
    %cst_30 = arith.constant dense<0.000000e+00> : vector<8x8xf32>
    %67 = tpu.matmul %65, %66, %cst_30 {dimension_numbers = #tpu.dot_dimension_numbers<[1], [0], [0], [1], [0, 0, 1, 1], [], []>} : vector<8x16xf32>, vector<16x8xf32>, vector<8x8xf32> -> vector<8x8xf32>
    %68 = vector.broadcast %6 : vector<1x8xf32> to vector<8x8xf32>
    %69 = arith.addf %67, %68 : vector<8x8xf32>
    %c0_31 = arith.constant 0 : index
    %c0_32 = arith.constant 0 : index
    %70 = vector.load %arg6[%c0_31, %c0_32] : memref<8x8xf32, #tpu.memory_space<vmem>>, vector<8x8xf32>
    tpu.vector_store %arg6[%c0_31, %c0_32], %69 {strides = array<i32>} : memref<8x8xf32, #tpu.memory_space<vmem>>, vector<8x8xf32>,
    return
  }
  func.func @transform_0(%arg0: i32) -> (i32, i32) {
    %c0_i32 = arith.constant 0 : i32
    %c0_i32_0 = arith.constant 0 : i32
    %c0_i32_1 = arith.constant 0 : i32
    return %c0_i32, %c0_i32_0 : i32, i32
  }
  func.func @transform_1(%arg0: i32) -> (i32, i32) {
    %c0_i32 = arith.constant 0 : i32
    %c0_i32_0 = arith.constant 0 : i32
    %c0_i32_1 = arith.constant 0 : i32
    return %c0_i32, %c0_i32_0 : i32, i32
  }
  func.func @transform_2(%arg0: i32) -> (i32, i32) {
    %c0_i32 = arith.constant 0 : i32
    %c0_i32_0 = arith.constant 0 : i32
    %c0_i32_1 = arith.constant 0 : i32
    return %c0_i32, %c0_i32_0 : i32, i32
  }
  func.func @transform_3(%arg0: i32) -> (i32, i32) {
    %c0_i32 = arith.constant 0 : i32
    %c0_i32_0 = arith.constant 0 : i32
    %c0_i32_1 = arith.constant 0 : i32
    return %c0_i32, %c0_i32_0 : i32, i32
  }
  func.func @transform_4(%arg0: i32) -> (i32, i32) {
    %c0_i32 = arith.constant 0 : i32
    %c0_i32_0 = arith.constant 0 : i32
    %c0_i32_1 = arith.constant 0 : i32
    return %c0_i32, %c0_i32_0 : i32, i32
  }
  func.func @transform_5(%arg0: i32) -> (i32, i32) {
    %c0_i32 = arith.constant 0 : i32
    %c0_i32_0 = arith.constant 0 : i32
    %c0_i32_1 = arith.constant 0 : i32
    return %c0_i32, %c0_i32_0 : i32, i32
  }
}

</mosaic_0001>

<llo_original>
// kernel: tpu_custom_call.1
$region0: #{tpu_custom_call.1}
  #allocation0 [shape = 'u32[]', space=smem, size = 0x4, offset = 0x4, fixed_abs, tag = 'smem constant byte address 0x4 - core index']
  #allocation1 [shape = 'u32[144,128]{1,0:T(1,128)}', space=vmem, size = 0x12000, scoped, tag = 'internal scratch']
  %s0 = inlined_call_operand.vmem [shape: f32[8,16], index: 0, kind: input, shape index: {}]
  %s1 = inlined_call_operand.vmem [shape: f32[16,32], index: 1, kind: input, shape index: {}]
  %s2 = inlined_call_operand.vmem [shape: f32[32,16], index: 2, kind: input, shape index: {}]
  %s3 = inlined_call_operand.vmem [shape: f32[16,8], index: 3, kind: input, shape index: {}]
  %s4 = inlined_call_operand.vmem [shape: f32[8,32], index: 4, kind: input, shape index: {}]
  %s5 = inlined_call_operand.hbm [shape: f32[8,8], index: 5, kind: output, shape index: {}]
  %s6 = sld [smem:[#allocation0]]
  $region30: #{tpu_custom_call.1} parent=0
    _
  %s8 = ssub.s32 1, %s6
  %s9 = scalar_select 0, %s8, %s6
  $region1: #{tpu_custom_call.1} parent=0
    #allocation2 [shape = 'u8[4096]{0}', space=vmem, size = 0x1000, scoped, tag = 'output window, operand 0, single buffered']
    #allocation3 [shape = 's32[1]{0}', space=sflag, size = 0x4, scoped, tag = 'scoped memory for tpu_custom_call.1']
    %10 = vsyncpa [#allocation3], 0
    // Predicated region
    $region2: #{tpu_custom_call.1} parent=1 // pred_check
      _
    $region3: #{tpu_custom_call.1} parent=1 // pred_check_branch
      %12 = sbr.rel (0) target = $region5
    $region4: #{tpu_custom_call.1} parent=1 // pred_region
      _
    $region5: #{tpu_custom_call.1} parent=1 // pred_fallthru
      _
    // Predicated region
    $region6: #{tpu_custom_call.1} parent=1 // pred_check
      _
    $region7: #{tpu_custom_call.1} parent=1 // pred_check_branch
      %14 = sbr.rel (0) target = $region9
    $region8: #{tpu_custom_call.1} parent=1 // pred_region
      _
    $region9: #{tpu_custom_call.1} parent=1 // pred_fallthru
      _
    // Predicated region
    $region10: #{tpu_custom_call.1} parent=1 // pred_check
      _
    $region11: #{tpu_custom_call.1} parent=1 // pred_check_branch
      %16 = sbr.rel (0) target = $region13
    $region12: #{tpu_custom_call.1} parent=1 // pred_region
      _
    $region13: #{tpu_custom_call.1} parent=1 // pred_fallthru
      _
    // Predicated region
    $region14: #{tpu_custom_call.1} parent=1 // pred_check
      _
    $region15: #{tpu_custom_call.1} parent=1 // pred_check_branch
      %18 = sbr.rel (0) target = $region17
    $region16: #{tpu_custom_call.1} parent=1 // pred_region
      _
    $region17: #{tpu_custom_call.1} parent=1 // pred_fallthru
      _
    // Predicated region
    $region18: #{tpu_custom_call.1} parent=1 // pred_check
      _
    $region19: #{tpu_custom_call.1} parent=1 // pred_check_branch
      %20 = sbr.rel (0) target = $region21
    $region20: #{tpu_custom_call.1} parent=1 // pred_region
      _
    $region21: #{tpu_custom_call.1} parent=1 // pred_fallthru
      _
    %v21 = vld [vmem:[%s4] sm:$0x1]
    %v22 = vld [vmem:[%s4 + $0x1] sm:$0x1]
    %v23 = vld [vmem:[%s4 + $0x2] sm:$0x1]
    %v24 = vld [vmem:[%s4 + $0x3] sm:$0x1]
    %v25 = vld [vmem:[%s4 + $0x4] sm:$0x1]
    %v26 = vld [vmem:[%s4 + $0x5] sm:$0x1]
    %v27 = vld [vmem:[%s4 + $0x6] sm:$0x1]
    %v28 = vld [vmem:[%s0] sm:$0xff]
    %v29 = vld [vmem:[%s1] sm:$0xff]
    %v30 = vld [vmem:[%s1 + $0x8] sm:$0xff]
    %v31 = vlaneseq
    %v32 = vshrl.u32 %v31, 7
    %v33 = vsub.s32 0, %v32
    %v34 = vrot.slane %v21, %v33
    %vm35 = vcmask 130048
    %v37 = vsel %vm35, %v28, 0
    %39 = vmatprep.subr.mxu0 0.0
    %40 = vmatpush1.msra.mxu0 0.0
    %41 = vmatprep.subr.mxu0 0.0
    %42 = vmatpush1.msra.mxu0 0.0
    %43 = vmatprep.subr.mxu0 0.0
    %44 = vmatpush1.msra.mxu0 0.0
    %45 = vmatprep.subr.mxu0 0.0
    %46 = vmatpush1.msra.mxu0 0.0
    %47 = vmatprep.subr.mxu0 0.0
    %48 = vmatpush1.msra.mxu0 0.0
    %49 = vmatprep.subr.mxu0 0.0
    %50 = vmatpush1.msra.mxu0 0.0
    %51 = vmatprep.subr.mxu0 0.0
    %52 = vmatpush1.msra.mxu0 0.0
    %53 = vmatprep.subr.mxu0 0.0
    %54 = vmatpush1.msra.mxu0 0.0
    %55 = vmatprep.subr.mxu0 0.0
    %56 = vmatpush1.msra.mxu0 0.0
    %57 = vmatprep.subr.mxu0 0.0
    %58 = vmatpush1.msra.mxu0 0.0
    %59 = vmatprep.subr.mxu0 0.0
    %60 = vmatpush1.msra.mxu0 0.0
    %61 = vmatprep.subr.mxu0 0.0
    %62 = vmatpush1.msra.mxu0 0.0
    %63 = vmatprep.subr.mxu0 0.0
    %64 = vmatpush1.msra.mxu0 0.0
    %65 = vmatprep.subr.mxu0 0.0
    %66 = vmatpush1.msra.mxu0 0.0
    %67 = vmatprep.subr.mxu0 0.0
    %68 = vmatpush1.msra.mxu0 %v30
    %69 = vmatprep.subr.mxu0 0.0
    %70 = vmatpush1.msra.mxu0 %v29
    %71 = vmatprep.subr.mxu0 0.0
    %72 = vmatpush2.msra.mxu0 0.0
    %73 = vmatprep.subr.mxu0 0.0
    %74 = vmatpush2.msra.mxu0 0.0
    %75 = vmatprep.subr.mxu0 0.0
    %76 = vmatpush2.msra.mxu0 0.0
    %77 = vmatprep.subr.mxu0 0.0
    %78 = vmatpush2.msra.mxu0 0.0
    %79 = vmatprep.subr.mxu0 0.0
    %80 = vmatpush2.msra.mxu0 0.0
    %81 = vmatprep.subr.mxu0 0.0
    %82 = vmatpush2.msra.mxu0 0.0
    %83 = vmatprep.subr.mxu0 0.0
    %84 = vmatpush2.msra.mxu0 0.0
    %85 = vmatprep.subr.mxu0 0.0
    %86 = vmatpush2.msra.mxu0 0.0
    %87 = vmatprep.subr.mxu0 0.0
    %88 = vmatpush2.msra.mxu0 0.0
    %89 = vmatprep.subr.mxu0 0.0
    %90 = vmatpush2.msra.mxu0 0.0
    %91 = vmatprep.subr.mxu0 0.0
    %92 = vmatpush2.msra.mxu0 0.0
    %93 = vmatprep.subr.mxu0 0.0
    %94 = vmatpush2.msra.mxu0 0.0
    %95 = vmatprep.subr.mxu0 0.0
    %96 = vmatpush2.msra.mxu0 0.0
    %97 = vmatprep.subr.mxu0 0.0
    %98 = vmatpush2.msra.mxu0 0.0
    %99 = vmatprep.subr.mxu0 0.0
    %100 = vmatpush2.msra.mxu0 0.0
    %101 = vmatprep.subr.mxu0 0.0
    %102 = vmatpush2.msra.mxu0 0.0
    %103 = vmatprep.mubr.f32.mxu0 0.0
    %104 = vmatmul.mubr.f32.gmra.mxu0 %v37
    %v105 = vpop.f32.mrf.mxu0
    %v106 = vadd.f32 %v34, %v105
    %v107 = vpop.f32.mrf.mxu0
    %108 = vdwg.mxu0
    %vm109 = vcmask 261120
    %v110 = vsel %vm109, %v106, 0.0
    %v111 = vrot.slane %v110, 4
    %v112 = vadd.f32 %v110, %v111
    %v113 = vrot.slane %v112, 2
    %v114 = vadd.f32 %v112, %v113
    %v115 = vrot.slane %v114, 1
    %v116 = vadd.f32 %v114, %v115
    %v117 = vmul.f32 %v106, %v106
    %v118 = vsel %vm109, %v117, 0.0
    %v119 = vrot.slane %v118, 4
    %v120 = vadd.f32 %v118, %v119
    %v121 = vrot.slane %v120, 2
    %v122 = vadd.f32 %v120, %v121
    %v123 = vrot.slane %v122, 1
    %v124 = vadd.f32 %v122, %v123
    %v125 = vmul.f32 %v116, 0.125
    %v126 = vmul.f32 %v124, 0.125
    %v127 = vmul.f32 %v125, %v125
    %v128 = vsub.f32 %v126, %v127
    %v129 = vmax.f32 %v128, 0.0
    %v130 = vadd.f32 %v129, 1e-05
    %v131 = vrsqrt.pop %v130
    %v132 = vmul.f32 %v22, %v131
    %v133 = vmul.f32 %v125, %v132
    %v134 = vsub.f32 %v23, %v133
    %v135 = vlaneseq
    %v136 = vshrl.u32 %v135, 7
    %v137 = vsub.s32 0, %v136
    %v138 = vrot.slane %v132, %v137
    %v139 = vmul.f32 %v106, %v138
    %v140 = vlaneseq
    %v141 = vshrl.u32 %v140, 7
    %v142 = vsub.s32 0, %v141
    %v143 = vrot.slane %v134, %v142
    %v144 = vadd.f32 %v139, %v143
    %v145 = vmax.f32 %v144, 0.0
    %v146 = vld [vmem:[%s2] sm:$0xff]
    %v147 = vld [vmem:[%s2 + $0x8] sm:$0xff]
    %v148 = vld [vmem:[%s2 + $0x10] sm:$0xff]
    %v149 = vld [vmem:[%s2 + $0x18] sm:$0xff]
    %v150 = vlaneseq
    %v151 = vshrl.u32 %v150, 7
    %v152 = vsub.s32 0, %v151
    %v153 = vrot.slane %v24, %v152
    %v155 = vsel %vm109, %v145, 0
    %157 = vmatprep.subr.mxu0 0.0
    %158 = vmatpush1.msra.mxu0 0.0
    %159 = vmatprep.subr.mxu0 0.0
    %160 = vmatpush1.msra.mxu0 0.0
    %161 = vmatprep.subr.mxu0 0.0
    %162 = vmatpush1.msra.mxu0 0.0
    %163 = vmatprep.subr.mxu0 0.0
    %164 = vmatpush1.msra.mxu0 0.0
    %165 = vmatprep.subr.mxu0 0.0
    %166 = vmatpush1.msra.mxu0 0.0
    %167 = vmatprep.subr.mxu0 0.0
    %168 = vmatpush1.msra.mxu0 0.0
    %169 = vmatprep.subr.mxu0 0.0
    %170 = vmatpush1.msra.mxu0 0.0
    %171 = vmatprep.subr.mxu0 0.0
    %172 = vmatpush1.msra.mxu0 0.0
    %173 = vmatprep.subr.mxu0 0.0
    %174 = vmatpush1.msra.mxu0 0.0
    %175 = vmatprep.subr.mxu0 0.0
    %176 = vmatpush1.msra.mxu0 0.0
    %177 = vmatprep.subr.mxu0 0.0
    %178 = vmatpush1.msra.mxu0 0.0
    %179 = vmatprep.subr.mxu0 0.0
    %180 = vmatpush1.msra.mxu0 0.0
    %181 = vmatprep.subr.mxu0 0.0
    %182 = vmatpush1.msra.mxu0 %v149
    %183 = vmatprep.subr.mxu0 0.0
    %184 = vmatpush1.msra.mxu0 %v148
    %185 = vmatprep.subr.mxu0 0.0
    %186 = vmatpush1.msra.mxu0 %v147
    %187 = vmatprep.subr.mxu0 0.0
    %188 = vmatpush1.msra.mxu0 %v146
    %189 = vmatprep.subr.mxu0 0.0
    %190 = vmatpush2.msra.mxu0 0.0
    %191 = vmatprep.subr.mxu0 0.0
    %192 = vmatpush2.msra.mxu0 0.0
    %193 = vmatprep.subr.mxu0 0.0
    %194 = vmatpush2.msra.mxu0 0.0
    %195 = vmatprep.subr.mxu0 0.0
    %196 = vmatpush2.msra.mxu0 0.0
    %197 = vmatprep.subr.mxu0 0.0
    %198 = vmatpush2.msra.mxu0 0.0
    %199 = vmatprep.subr.mxu0 0.0
    %200 = vmatpush2.msra.mxu0 0.0
    %201 = vmatprep.subr.mxu0 0.0
    %202 = vmatpush2.msra.mxu0 0.0
    %203 = vmatprep.subr.mxu0 0.0
    %204 = vmatpush2.msra.mxu0 0.0
    %205 = vmatprep.subr.mxu0 0.0
    %206 = vmatpush2.msra.mxu0 0.0
    %207 = vmatprep.subr.mxu0 0.0
    %208 = vmatpush2.msra.mxu0 0.0
    %209 = vmatprep.subr.mxu0 0.0
    %210 = vmatpush2.msra.mxu0 0.0
    %211 = vmatprep.subr.mxu0 0.0
    %212 = vmatpush2.msra.mxu0 0.0
    %213 = vmatprep.subr.mxu0 0.0
    %214 = vmatpush2.msra.mxu0 0.0
    %215 = vmatprep.subr.mxu0 0.0
    %216 = vmatpush2.msra.mxu0 0.0
    %217 = vmatprep.subr.mxu0 0.0
    %218 = vmatpush2.msra.mxu0 0.0
    %219 = vmatprep.subr.mxu0 0.0
    %220 = vmatpush2.msra.mxu0 0.0
    %221 = vmatprep.mubr.f32.mxu0 0.0
    %222 = vmatmul.mubr.f32.gmra.mxu0 %v155
    %v223 = vpop.f32.mrf.mxu0
    %v224 = vadd.f32 %v153, %v223
    %v225 = vpop.f32.mrf.mxu0
    %226 = vdwg.mxu0
    %v227 = vsel %vm35, %v224, 0.0
    %v228 = vrot.slane %v227, 4
    %v229 = vadd.f32 %v227, %v228
    %v230 = vrot.slane %v229, 2
    %v231 = vadd.f32 %v229, %v230
    %v232 = vrot.slane %v231, 1
    %v233 = vadd.f32 %v231, %v232
    %v234 = vmul.f32 %v224, %v224
    %v235 = vsel %vm35, %v234, 0.0
    %v236 = vrot.slane %v235, 4
    %v237 = vadd.f32 %v235, %v236
    %v238 = vrot.slane %v237, 2
    %v239 = vadd.f32 %v237, %v238
    %v240 = vrot.slane %v239, 1
    %v241 = vadd.f32 %v239, %v240
    %v242 = vmul.f32 %v233, 0.125
    %v243 = vmul.f32 %v241, 0.125
    %v244 = vmul.f32 %v242, %v242
    %v245 = vsub.f32 %v243, %v244
    %v246 = vmax.f32 %v245, 0.0
    %v247 = vadd.f32 %v246, 1e-05
    %v248 = vrsqrt.pop %v247
    %v249 = vmul.f32 %v25, %v248
    %v250 = vmul.f32 %v242, %v249
    %v251 = vsub.f32 %v26, %v250
    %v252 = vlaneseq
    %v253 = vshrl.u32 %v252, 7
    %v254 = vsub.s32 0, %v253
    %v255 = vrot.slane %v249, %v254
    %v256 = vmul.f32 %v224, %v255
    %v257 = vlaneseq
    %v258 = vshrl.u32 %v257, 7
    %v259 = vsub.s32 0, %v258
    %v260 = vrot.slane %v251, %v259
    %v261 = vadd.f32 %v256, %v260
    %v262 = vmax.f32 %v261, 0.0
    %v263 = vld [vmem:[%s3] sm:$0xff]
    %v264 = vld [vmem:[%s3 + $0x8] sm:$0xff]
    %v265 = vlaneseq
    %v266 = vshrl.u32 %v265, 7
    %v267 = vsub.s32 0, %v266
    %v268 = vrot.slane %v27, %v267
    %v270 = vsel %vm35, %v262, 0
    %272 = vmatprep.subr.mxu0 0.0
    %273 = vmatpush1.msra.mxu0 0.0
    %274 = vmatprep.subr.mxu0 0.0
    %275 = vmatpush1.msra.mxu0 0.0
    %276 = vmatprep.subr.mxu0 0.0
    %277 = vmatpush1.msra.mxu0 0.0
    %278 = vmatprep.subr.mxu0 0.0
    %279 = vmatpush1.msra.mxu0 0.0
    %280 = vmatprep.subr.mxu0 0.0
    %281 = vmatpush1.msra.mxu0 0.0
    %282 = vmatprep.subr.mxu0 0.0
    %283 = vmatpush1.msra.mxu0 0.0
    %284 = vmatprep.subr.mxu0 0.0
    %285 = vmatpush1.msra.mxu0 0.0
    %286 = vmatprep.subr.mxu0 0.0
    %287 = vmatpush1.msra.mxu0 0.0
    %288 = vmatprep.subr.mxu0 0.0
    %289 = vmatpush1.msra.mxu0 0.0
    %290 = vmatprep.subr.mxu0 0.0
    %291 = vmatpush1.msra.mxu0 0.0
    %292 = vmatprep.subr.mxu0 0.0
    %293 = vmatpush1.msra.mxu0 0.0
    %294 = vmatprep.subr.mxu0 0.0
    %295 = vmatpush1.msra.mxu0 0.0
    %296 = vmatprep.subr.mxu0 0.0
    %297 = vmatpush1.msra.mxu0 0.0
    %298 = vmatprep.subr.mxu0 0.0
    %299 = vmatpush1.msra.mxu0 0.0
    %300 = vmatprep.subr.mxu0 0.0
    %301 = vmatpush1.msra.mxu0 %v264
    %302 = vmatprep.subr.mxu0 0.0
    %303 = vmatpush1.msra.mxu0 %v263
    %304 = vmatprep.subr.mxu0 0.0
    %305 = vmatpush2.msra.mxu0 0.0
    %306 = vmatprep.subr.mxu0 0.0
    %307 = vmatpush2.msra.mxu0 0.0
    %308 = vmatprep.subr.mxu0 0.0
    %309 = vmatpush2.msra.mxu0 0.0
    %310 = vmatprep.subr.mxu0 0.0
    %311 = vmatpush2.msra.mxu0 0.0
    %312 = vmatprep.subr.mxu0 0.0
    %313 = vmatpush2.msra.mxu0 0.0
    %314 = vmatprep.subr.mxu0 0.0
    %315 = vmatpush2.msra.mxu0 0.0
    %316 = vmatprep.subr.mxu0 0.0
    %317 = vmatpush2.msra.mxu0 0.0
    %318 = vmatprep.subr.mxu0 0.0
    %319 = vmatpush2.msra.mxu0 0.0
    %320 = vmatprep.subr.mxu0 0.0
    %321 = vmatpush2.msra.mxu0 0.0
    %322 = vmatprep.subr.mxu0 0.0
    %323 = vmatpush2.msra.mxu0 0.0
    %324 = vmatprep.subr.mxu0 0.0
    %325 = vmatpush2.msra.mxu0 0.0
    %326 = vmatprep.subr.mxu0 0.0
    %327 = vmatpush2.msra.mxu0 0.0
    %328 = vmatprep.subr.mxu0 0.0
    %329 = vmatpush2.msra.mxu0 0.0
    %330 = vmatprep.subr.mxu0 0.0
    %331 = vmatpush2.msra.mxu0 0.0
    %332 = vmatprep.subr.mxu0 0.0
    %333 = vmatpush2.msra.mxu0 0.0
    %334 = vmatprep.subr.mxu0 0.0
    %335 = vmatpush2.msra.mxu0 0.0
    %336 = vmatprep.mubr.f32.mxu0 0.0
    %337 = vmatmul.mubr.f32.gmra.mxu0 %v270
    %v338 = vpop.f32.mrf.mxu0
    %v339 = vadd.f32 %v268, %v338
    %v340 = vpop.f32.mrf.mxu0
    %341 = vdwg.mxu0
    %vm342 = vcmask 64512
    %343 = vst.msk [vmem:[#allocation2] sm:$0xff] %vm342, %v339
    // Predicated region
    $region22: #{tpu_custom_call.1} parent=1 // pred_check
      _
    $region23: #{tpu_custom_call.1} parent=1 // pred_check_branch
      %345 = sbr.rel (0) target = $region25
    $region24: #{tpu_custom_call.1} parent=1 // pred_region
      %s347 = ssub.s32 128, 128
      %348 = vsyncadd [#allocation3], %s347
      %s350 = sshll.u32 [#allocation2], 4
      %s351 = int_to_ptr.vmem [resolvable:$true] %s350
      %353 = dma.vmem_to_hbm [thread:$0]  %s351, 128, %s5, [#allocation3]
    $region25: #{tpu_custom_call.1} parent=1 // pred_fallthru
      _
    // Predicated region
    $region26: #{tpu_custom_call.1} parent=1 // pred_check
      _
    $region27: #{tpu_custom_call.1} parent=1 // pred_check_branch
      %355 = sbr.rel (0) target = $region29
    $region28: #{tpu_custom_call.1} parent=1 // pred_region
      %356 = dma.done [#allocation3], 128
    $region29: #{tpu_custom_call.1} parent=1 // pred_fallthru
      _
    %357 = vsyncpa [#allocation3], 1

</llo_original>
